<compile_context>
chip_gen: v7x
topology: tpu7x:2x2x1
jax: 0.10.0
libtpu: 0.0.40
codegen_flags: <defaults>
</compile_context>

<pallas_src>
from collections import defaultdict
from functools import partial

import numpy as np
import jax
import jax.numpy as jnp
from jax.experimental import pallas as pl
from jax.experimental.pallas import tpu as pltpu


def _round_up(x, m):
    return ((x + m - 1) // m) * m


def _pad_dim0(x, target):
    pad = target - x.shape[0]
    if pad == 0:
        return x
    widths = [(0, pad)] + [(0, 0)] * (x.ndim - 1)
    return jnp.pad(x, widths)


# ---------------------------------------------------------------------------
# Kernel 1: fused similarity + rank-counting.
#   grid = (num_query_tiles [parallel], num_item_tiles [arbitrary, reduction])
#   scores tile is (tile_n items on sublanes, tile_q queries on the lane axis),
#   so the per-query "count items with score > target_score" is a sublane
#   reduction and the (1, tile_q) accumulator is lane-dense.
# ---------------------------------------------------------------------------
def _rank_count_kernel(q_ref, e_ref, tl_ref, cnt_ref, *, tile_n, n_items):
    ni = pl.program_id(1)

    @pl.when(ni == 0)
    def _init():
        cnt_ref[...] = jnp.zeros_like(cnt_ref)

    # (tile_n, tile_q) scores on the MXU; bf16/f32 inputs go in directly,
    # accumulation is f32.
    s = jax.lax.dot_general(
        e_ref[...], q_ref[...],
        dimension_numbers=(((1,), (1,)), ((), ())),
        preferred_element_type=jnp.float32)

    # Mask padded item rows (tail handling for N not a multiple of tile_n).
    item_ids = ni * tile_n + jax.lax.broadcasted_iota(jnp.int32, s.shape, 0)
    valid = item_ids < n_items
    gt = jnp.logical_and(valid, s > tl_ref[...])          # tl: (1, tile_q)
    cnt_ref[...] += jnp.sum(gt.astype(jnp.float32), axis=0, keepdims=True)


# ---------------------------------------------------------------------------
# Kernel 2: HR / MRR / NDCG values from the 1-based ranks (lane-dense rows).
# ---------------------------------------------------------------------------
def _metric_values_kernel(rank_ref, out_ref, *, mtype_topk):
    r = rank_ref[...].astype(jnp.float32)                  # (1, tile_q), r >= 1
    inv_r = pl.reciprocal(r, approx=True)                  # EUP slot, ~free
    for i, (mtype, topk) in enumerate(mtype_topk):
        if mtype == "HR":
            row = (r < float(topk)).astype(jnp.float32)    # torch: ranks < topk
        elif mtype == "MRR":
            row = inv_r
        elif mtype == "NDCG":
            row = jnp.where(r <= float(topk),
                            pl.reciprocal(jnp.log2(r + 1.0), approx=True),
                            jnp.zeros_like(r))
        else:
            raise ValueError(f"unsupported metric type {mtype}")
        out_ref[pl.ds(i, 1), :] = row


# ---------------------------------------------------------------------------
# Wrappers around pallas_call
# ---------------------------------------------------------------------------
def compute_eval_ranks(query_embeddings, target_ids, keys, values, max_k,
                       *, tile_q=128, tile_n=512):
    """query: [Q, D], target_ids: [Q] i32, keys: [N] i32, values: [N, D] -> ranks [Q] i32."""
    Q, D = query_embeddings.shape
    N, Dv = values.shape
    assert D == Dv
    target_ids = target_ids.astype(jnp.int32)
    keys = keys.astype(jnp.int32)

    # Target score per query via key-match + gather + elementwise dot.
    # O(Q*N + Q*D), negligible next to the O(Q*N*D) counting kernel.
    # TODO(synk): this data-dependent gather could move into a scalar-prefetch
    # Pallas kernel; kept in plain JAX since it is not the hot path.
    match = keys[None, :] == target_ids[:, None]
    found = jnp.any(match, axis=1)
    t_emb = values[jnp.argmax(match, axis=1)]
    t_logit = jnp.sum(query_embeddings.astype(jnp.float32)
                      * t_emb.astype(jnp.float32), axis=-1)

    qp = _round_up(Q, tile_q)                      # queries -> lane axis multiple of 128
    tile_n = min(tile_n, _round_up(N, 8))          # items  -> sublane axis multiple of 8
    np_ = _round_up(N, tile_n)

    q_pad = _pad_dim0(query_embeddings, qp)
    e_pad = _pad_dim0(values, np_)
    tl_pad = _pad_dim0(t_logit, qp).reshape(1, qp)

    grid = (qp // tile_q, np_ // tile_n)
    cnt = pl.pallas_call(
        partial(_rank_count_kernel, tile_n=tile_n, n_items=N),
        out_shape=jax.ShapeDtypeStruct((1, qp), jnp.float32),
        grid_spec=pltpu.PrefetchScalarGridSpec(
            num_scalar_prefetch=0,
            grid=grid,
            in_specs=[
                pl.BlockSpec((tile_q, D), lambda qi, ni: (qi, 0)),   # resident across ni
                pl.BlockSpec((tile_n, D), lambda qi, ni: (ni, 0)),
                pl.BlockSpec((1, tile_q), lambda qi, ni: (0, qi)),   # lane-dense row
            ],
            out_specs=pl.BlockSpec((1, tile_q), lambda qi, ni: (0, qi)),
        ),
        compiler_params=pltpu.CompilerParams(
            dimension_semantics=("parallel", "arbitrary")),
    )(q_pad, e_pad, tl_pad)

    cnt = cnt[0, :Q].astype(jnp.int32)
    k = min(max_k, N)
    rank = cnt + 1
    # TODO(synk): ties with the target score count as "strictly greater only",
    # whereas torch.topk's tie order is unspecified.
    return jnp.where(jnp.logical_and(found, rank <= k), rank, max_k + 1)


def metric_values(eval_ranks, mtype_topk, *, tile_q=128):
    """eval_ranks: [Q] i32 -> per-metric values [num_metrics, Q] f32."""
    Q = eval_ranks.shape[0]
    qp = _round_up(Q, tile_q)
    m = len(mtype_topk)
    r_pad = jnp.pad(eval_ranks.astype(jnp.float32), (0, qp - Q),
                    constant_values=1.0).reshape(1, qp)
    vals = pl.pallas_call(
        partial(_metric_values_kernel, mtype_topk=tuple(mtype_topk)),
        out_shape=jax.ShapeDtypeStruct((m, qp), jnp.float32),
        grid_spec=pltpu.PrefetchScalarGridSpec(
            num_scalar_prefetch=0,
            grid=(qp // tile_q,),
            in_specs=[pl.BlockSpec((1, tile_q), lambda i: (0, i))],
            out_specs=pl.BlockSpec((m, tile_q), lambda i: (0, i)),
        ),
        compiler_params=pltpu.CompilerParams(
            dimension_semantics=("parallel",)),
    )(r_pad)
    return vals[:, :Q]


# ---------------------------------------------------------------------------
# Module-equivalent wrapper
# ---------------------------------------------------------------------------
class RetrievalTaskMetricWithSampling:
    """JAX/Pallas equivalent of the PyTorch RetrievalTaskMetricWithSampling.

    forward() only caches query embeddings / target ids (exactly like the torch
    module); compute() runs the retrieval-rank evaluation, whose hot path
    (query x item-table similarity, rank extraction, HR/MRR/NDCG values) runs in
    Pallas kernels. The module has no learnable parameters.
    """

    def __init__(self, metric_types=("NDCG@10",), MAX_K=2500):
        self._max_k = MAX_K
        self._mtype_topk = []
        for metric_type in metric_types:
            parts = metric_type.split("@")
            mtype = parts[0]
            topk = 10 if len(parts) < 2 else int(parts[1])
            if mtype not in ("NDCG", "HR", "MRR"):
                raise ValueError(f"unsupported metric type {mtype}")
            self._mtype_topk.append((mtype, topk))
        self._cache_query_embeddings = []
        self._cache_target_ids = []

    def __call__(self, query_embeddings, target_ids):
        """Forward pass: cache the eval batch; returns None (like PyTorch)."""
        self._cache_query_embeddings.append(query_embeddings)
        self._cache_target_ids.append(jnp.asarray(target_ids, jnp.int32))
        return None

    def compute(self, keys_array, values_array):
        keys = jnp.asarray(keys_array, jnp.int32)
        values = jnp.asarray(values_array)
        if keys.shape[0] == 0:
            raise ValueError("No local item shard. Evaluation failed.")
        # TODO(synk): grouped_allgatherv_tensor_list across data-parallel/WORLD
        # process groups is distributed glue with no single-chip Pallas
        # equivalent; this implements the single-shard evaluation path.
        eval_dict_all = defaultdict(list)
        last_query_embeddings = None
        for q, t in zip(self._cache_query_embeddings, self._cache_target_ids):
            eval_ranks = compute_eval_ranks(q, t, keys, values, self._max_k)
            vals = metric_values(eval_ranks, self._mtype_topk)
            for m, (mtype, topk) in enumerate(self._mtype_topk):
                eval_dict_all[f"{mtype}@{topk}"].append(vals[m])
            last_query_embeddings = q

        final_eval_dict = {}
        for name, chunks in eval_dict_all.items():
            res = jnp.concatenate(chunks, axis=-1)
            final_eval_dict[name] = float(res.sum() / res.size)

        # TODO(synk): the returned global top-K logits/keys use jax.lax.top_k in
        # the wrapper (the streaming chunked torch.topk scan has no clean Pallas
        # equivalent here); the metric ranks above do not need the top-K list.
        k = min(self._max_k, keys.shape[0])
        logits = (last_query_embeddings.astype(jnp.float32)
                  @ values.astype(jnp.float32).T)
        global_topk_logits, topk_idx = jax.lax.top_k(logits, k)
        global_topk_keys = keys[topk_idx]

        self._cache_query_embeddings.clear()
        self._cache_target_ids.clear()
        return final_eval_dict, global_topk_logits, global_topk_keys


# ---------------------------------------------------------------------------
if __name__ == "__main__":
    key = jax.random.PRNGKey(0)
    kq1, kq2, kv, kt1, kt2 = jax.random.split(key, 5)

    Q, D, N, MAX_K = 20, 64, 300, 40

    # Integer-valued embeddings keep every dot product exactly representable, so
    # the kernel's rank counting matches the plain-JAX reference bit-for-bit.
    values = jax.random.randint(kv, (N, D), -3, 4).astype(jnp.float32)
    keys = jnp.arange(N, dtype=jnp.int32) * 2 + 101            # unique item ids

    def make_batch(kq, kt):
        q = jax.random.randint(kq, (Q, D), -3, 4).astype(jnp.float32)
        t = keys[jax.random.randint(kt, (Q,), 0, N, dtype=jnp.int32)]
        return q, t

    q1, t1 = make_batch(kq1, kt1)
    q2, t2 = make_batch(kq2, kt2)
    t1 = t1.at[0].set(-7).at[5].set(999999)   # target ids absent from the table

    metric = RetrievalTaskMetricWithSampling(
        metric_types=("NDCG@10", "HR@10", "MRR"), MAX_K=MAX_K)
    assert metric(q1, t1) is None             # forward just caches
    assert metric(q2, t2) is None

    # Direct kernel check against a plain-JAX reference of the rank semantics.
    def ref_ranks(q, t):
        logits = q @ values.T
        match = keys[None, :] == t[:, None]
        fnd = jnp.any(match, axis=1)
        tl = jnp.sum(q * values[jnp.argmax(match, axis=1)], axis=-1)
        cnt = jnp.sum((logits > tl[:, None]).astype(jnp.int32), axis=1)
        k = min(MAX_K, N)
        return jnp.where(jnp.logical_and(fnd, cnt + 1 <= k), cnt + 1, MAX_K + 1)

    r1 = compute_eval_ranks(q1, t1, keys, values, MAX_K)
    r2 = compute_eval_ranks(q2, t2, keys, values, MAX_K)
    jax.block_until_ready((r1, r2))
    rr1, rr2 = ref_ranks(q1, t1), ref_ranks(q2, t2)
    assert jnp.array_equal(r1, rr1)
    assert jnp.array_equal(r2, rr2)

    # End-to-end compute() check (HR exact; MRR/NDCG use approx reciprocal).
    final_dict, topk_logits, topk_keys = metric.compute(np.asarray(keys),
                                                        np.asarray(values))
    jax.block_until_ready((topk_logits, topk_keys))
    assert topk_logits.shape == (Q, min(MAX_K, N))
    assert topk_keys.shape == (Q, min(MAX_K, N))

    all_r = jnp.concatenate([rr1, rr2]).astype(jnp.float32)
    hr_ref = float((all_r < 10).astype(jnp.float32).mean())
    mrr_ref = float((1.0 / all_r).mean())
    ndcg_ref = float(jnp.where(all_r <= 10,
                               1.0 / jnp.log2(all_r + 1.0), 0.0).mean())

    assert abs(final_dict["HR@10"] - hr_ref) < 1e-6
    assert abs(final_dict["MRR@10"] - mrr_ref) < 1e-2
    assert abs(final_dict["NDCG@10"] - ndcg_ref) < 1e-2

    print("KERNEL_OK")
</pallas_src>

<mosaic_0001>
module attributes {stable_mosaic.version = 11 : i64} {
  func.func @_rank_count_kernel(%arg0: i32, %arg1: i32, %arg2: memref<128x64xf32, #tpu.memory_space<vmem>>, %arg3: memref<304x64xf32, #tpu.memory_space<vmem>>, %arg4: memref<1x128xf32, #tpu.memory_space<vmem>>, %arg5: memref<1x128xf32, #tpu.memory_space<vmem>>) attributes {dimension_semantics = [#tpu.dimension_semantics<parallel>, #tpu.dimension_semantics<arbitrary>], iteration_bounds = array<i64: 1, 1>, scalar_prefetch = 0 : i64, scratch_operands = 0 : i64, tpu.core_type = #tpu.core_type<tc>, window_params = [{transform_indices = @transform_0, window_bounds = array<i64: 128, 64>}, {transform_indices = @transform_1, window_bounds = array<i64: 304, 64>}, {transform_indices = @transform_2, window_bounds = array<i64: 1, 128>}, {transform_indices = @transform_3, window_bounds = array<i64: 1, 128>}]} {
    %c0_i32 = arith.constant 0 : i32
    %0 = arith.cmpi eq, %arg1, %c0_i32 : i32
    %1 = arith.extui %0 : i1 to i32
    %c0_i32_0 = arith.constant 0 : i32
    %2 = arith.cmpi ne, %1, %c0_i32_0 : i32
    scf.if %2 {
      %cst_11 = arith.constant 0.000000e+00 : f32
      %23 = vector.broadcast %cst_11 : f32 to vector<1x128xf32>
      %c0_12 = arith.constant 0 : index
      %c0_13 = arith.constant 0 : index
      %24 = vector.load %arg5[%c0_12, %c0_13] : memref<1x128xf32, #tpu.memory_space<vmem>>, vector<1x128xf32>
      tpu.vector_store %arg5[%c0_12, %c0_13], %23 {strides = array<i32>} : memref<1x128xf32, #tpu.memory_space<vmem>>, vector<1x128xf32>,
    } else {
    }
    %c0 = arith.constant 0 : index
    %c0_1 = arith.constant 0 : index
    %3 = vector.load %arg3[%c0, %c0_1] : memref<304x64xf32, #tpu.memory_space<vmem>>, vector<304x64xf32>
    %c0_2 = arith.constant 0 : index
    %c0_3 = arith.constant 0 : index
    %4 = vector.load %arg2[%c0_2, %c0_3] : memref<128x64xf32, #tpu.memory_space<vmem>>, vector<128x64xf32>
    %cst = arith.constant dense<0.000000e+00> : vector<304x128xf32>
    %5 = tpu.matmul %3, %4, %cst {dimension_numbers = #tpu.dot_dimension_numbers<[1], [1], [0], [0], [0, 0, 1, 0], [], []>} : vector<304x64xf32>, vector<128x64xf32>, vector<304x128xf32> -> vector<304x128xf32>
    %c304_i32 = arith.constant 304 : i32
    %6 = arith.muli %arg1, %c304_i32 : i32
    %7 = tpu.iota {dimensions = array<i32: 0>} : vector<304x128xi32>
    %8 = vector.broadcast %6 : i32 to vector<304x128xi32>
    %9 = arith.addi %8, %7 : vector<304x128xi32>
    %c300_i32 = arith.constant 300 : i32
    %10 = vector.broadcast %c300_i32 : i32 to vector<304x128xi32>
    %11 = arith.cmpi slt, %9, %10 : vector<304x128xi32>
    %c0_4 = arith.constant 0 : index
    %c0_5 = arith.constant 0 : index
    %12 = vector.load %arg4[%c0_4, %c0_5] : memref<1x128xf32, #tpu.memory_space<vmem>>, vector<1x128xf32>
    %13 = vector.broadcast %12 : vector<1x128xf32> to vector<304x128xf32>
    %14 = arith.cmpf ogt, %5, %13 : vector<304x128xf32>
    %15 = arith.andi %11, %14 : vector<304x128xi1>
    %c0_6 = arith.constant 0 : index
    %c0_7 = arith.constant 0 : index
    %16 = vector.load %arg5[%c0_6, %c0_7] : memref<1x128xf32, #tpu.memory_space<vmem>>, vector<1x128xf32>
    %17 = arith.extui %15 : vector<304x128xi1> to vector<304x128xi32>
    %18 = arith.sitofp %17 : vector<304x128xi32> to vector<304x128xf32>
    %cst_8 = arith.constant dense<0.000000e+00> : vector<128xf32>
    %19 = vector.multi_reduction <add>, %18, %cst_8 [0] : vector<304x128xf32> to vector<128xf32>
    %20 = vector.shape_cast %19 : vector<128xf32> to vector<1x128xf32>
    %21 = arith.addf %16, %20 : vector<1x128xf32>
    %c0_9 = arith.constant 0 : index
    %c0_10 = arith.constant 0 : index
    %22 = vector.load %arg5[%c0_9, %c0_10] : memref<1x128xf32, #tpu.memory_space<vmem>>, vector<1x128xf32>
    tpu.vector_store %arg5[%c0_9, %c0_10], %21 {strides = array<i32>} : memref<1x128xf32, #tpu.memory_space<vmem>>, vector<1x128xf32>,
    return
  }
  func.func @transform_0(%arg0: i32, %arg1: i32) -> (i32, i32) {
    %c0_i32 = arith.constant 0 : i32
    %c0_i32_0 = arith.constant 0 : i32
    return %arg0, %c0_i32 : i32, i32
  }
  func.func @transform_1(%arg0: i32, %arg1: i32) -> (i32, i32) {
    %c0_i32 = arith.constant 0 : i32
    %c0_i32_0 = arith.constant 0 : i32
    return %arg1, %c0_i32 : i32, i32
  }
  func.func @transform_2(%arg0: i32, %arg1: i32) -> (i32, i32) {
    %c0_i32 = arith.constant 0 : i32
    %c0_i32_0 = arith.constant 0 : i32
    return %c0_i32, %arg0 : i32, i32
  }
  func.func @transform_3(%arg0: i32, %arg1: i32) -> (i32, i32) {
    %c0_i32 = arith.constant 0 : i32
    %c0_i32_0 = arith.constant 0 : i32
    return %c0_i32, %arg0 : i32, i32
  }
}

</mosaic_0001>

<llo_original>
// kernel: tpu_custom_call.1
$region0: #{tpu_custom_call.1}
  #allocation0 [shape = 'u32[]', space=smem, size = 0x4, offset = 0x4, fixed_abs, tag = 'smem constant byte address 0x4 - core index']
  #allocation1 [shape = 'u32[144,128]{1,0:T(1,128)}', space=vmem, size = 0x12000, scoped, tag = 'internal scratch']
  %s0 = inlined_call_operand.vmem [shape: f32[128,64], index: 0, kind: input, shape index: {}]
  %s1 = inlined_call_operand.vmem [shape: f32[304,64], index: 1, kind: input, shape index: {}]
  %s2 = inlined_call_operand.vmem [shape: f32[1,128], index: 2, kind: input, shape index: {}]
  %s3 = inlined_call_operand.hbm [shape: f32[1,128], index: 3, kind: output, shape index: {}]
  %s4 = sld [smem:[#allocation0]]
  $region26: #{tpu_custom_call.1} parent=0
    _
  %s6 = ssub.s32 1, %s4
  %s7 = scalar_select 0, %s6, %s4
  $region1: #{tpu_custom_call.1} parent=0
    #allocation2 [shape = 'u8[512]{0}', space=vmem, size = 0x400, scoped, tag = 'output window, operand 0, single buffered']
    #allocation3 [shape = 's32[1]{0}', space=sflag, size = 0x4, scoped, tag = 'scoped memory for tpu_custom_call.1']
    %8 = vsyncpa [#allocation3], 0
    // Predicated region
    $region2: #{tpu_custom_call.1} parent=1 // pred_check
      _
    $region3: #{tpu_custom_call.1} parent=1 // pred_check_branch
      %10 = sbr.rel (0) target = $region5
    $region4: #{tpu_custom_call.1} parent=1 // pred_region
      _
    $region5: #{tpu_custom_call.1} parent=1 // pred_fallthru
      _
    // Predicated region
    $region6: #{tpu_custom_call.1} parent=1 // pred_check
      _
    $region7: #{tpu_custom_call.1} parent=1 // pred_check_branch
      %12 = sbr.rel (0) target = $region9
    $region8: #{tpu_custom_call.1} parent=1 // pred_region
      _
    $region9: #{tpu_custom_call.1} parent=1 // pred_fallthru
      _
    // Predicated region
    $region10: #{tpu_custom_call.1} parent=1 // pred_check
      _
    $region11: #{tpu_custom_call.1} parent=1 // pred_check_branch
      %14 = sbr.rel (0) target = $region13
    $region12: #{tpu_custom_call.1} parent=1 // pred_region
      _
    $region13: #{tpu_custom_call.1} parent=1 // pred_fallthru
      _
    %p15 = scmp.eq.s32.totalorder 0, 0
    // Predicated region
    $region14: #{tpu_custom_call.1} parent=1 // pred_check
      %p16 = pneg %p15
    $region15: #{tpu_custom_call.1} parent=1 // pred_check_branch
      %18 = sbr.rel (%p16) target = $region17
    $region16: #{tpu_custom_call.1} parent=1 // pred_region
      %19 = vst [vmem:[#allocation2] sm:$0x1] 0.0
    $region17: #{tpu_custom_call.1} parent=1 // pred_fallthru
      _
    %v20 = vld [vmem:[%s1] sm:$0xff]
    %v21 = vld [vmem:[%s1 + $0x8] sm:$0xff]
    %v22 = vld [vmem:[%s1 + $0x10] sm:$0xff]
    %v23 = vld [vmem:[%s1 + $0x18] sm:$0xff]
    %v24 = vld [vmem:[%s1 + $0x20] sm:$0xff]
    %v25 = vld [vmem:[%s1 + $0x28] sm:$0xff]
    %v26 = vld [vmem:[%s1 + $0x30] sm:$0xff]
    %v27 = vld [vmem:[%s1 + $0x38] sm:$0xff]
    %v28 = vld [vmem:[%s1 + $0x40] sm:$0xff]
    %v29 = vld [vmem:[%s1 + $0x48] sm:$0xff]
    %v30 = vld [vmem:[%s1 + $0x50] sm:$0xff]
    %v31 = vld [vmem:[%s1 + $0x58] sm:$0xff]
    %v32 = vld [vmem:[%s1 + $0x60] sm:$0xff]
    %v33 = vld [vmem:[%s1 + $0x68] sm:$0xff]
    %v34 = vld [vmem:[%s1 + $0x70] sm:$0xff]
    %v35 = vld [vmem:[%s1 + $0x78] sm:$0xff]
    %v36 = vld [vmem:[%s1 + $0x80] sm:$0xff]
    %v37 = vld [vmem:[%s1 + $0x88] sm:$0xff]
    %v38 = vld [vmem:[%s1 + $0x90] sm:$0xff]
    %v39 = vld [vmem:[%s1 + $0x98] sm:$0xff]
    %v40 = vld [vmem:[%s1 + $0xa0] sm:$0xff]
    %v41 = vld [vmem:[%s1 + $0xa8] sm:$0xff]
    %v42 = vld [vmem:[%s1 + $0xb0] sm:$0xff]
    %v43 = vld [vmem:[%s1 + $0xb8] sm:$0xff]
    %v44 = vld [vmem:[%s1 + $0xc0] sm:$0xff]
    %v45 = vld [vmem:[%s1 + $0xc8] sm:$0xff]
    %v46 = vld [vmem:[%s1 + $0xd0] sm:$0xff]
    %v47 = vld [vmem:[%s1 + $0xd8] sm:$0xff]
    %v48 = vld [vmem:[%s1 + $0xe0] sm:$0xff]
    %v49 = vld [vmem:[%s1 + $0xe8] sm:$0xff]
    %v50 = vld [vmem:[%s1 + $0xf0] sm:$0xff]
    %v51 = vld [vmem:[%s1 + $0xf8] sm:$0xff]
    %v52 = vld [vmem:[%s1 + $0x100] sm:$0xff]
    %v53 = vld [vmem:[%s1 + $0x108] sm:$0xff]
    %v54 = vld [vmem:[%s1 + $0x110] sm:$0xff]
    %v55 = vld [vmem:[%s1 + $0x118] sm:$0xff]
    %v56 = vld [vmem:[%s1 + $0x120] sm:$0xff]
    %v57 = vld [vmem:[%s1 + $0x128] sm:$0xff]
    %v58 = vld [vmem:[%s0] sm:$0xff]
    %v59 = vld [vmem:[%s0 + $0x8] sm:$0xff]
    %v60 = vld [vmem:[%s0 + $0x10] sm:$0xff]
    %v61 = vld [vmem:[%s0 + $0x18] sm:$0xff]
    %v62 = vld [vmem:[%s0 + $0x20] sm:$0xff]
    %v63 = vld [vmem:[%s0 + $0x28] sm:$0xff]
    %v64 = vld [vmem:[%s0 + $0x30] sm:$0xff]
    %v65 = vld [vmem:[%s0 + $0x38] sm:$0xff]
    %v66 = vld [vmem:[%s0 + $0x40] sm:$0xff]
    %v67 = vld [vmem:[%s0 + $0x48] sm:$0xff]
    %v68 = vld [vmem:[%s0 + $0x50] sm:$0xff]
    %v69 = vld [vmem:[%s0 + $0x58] sm:$0xff]
    %v70 = vld [vmem:[%s0 + $0x60] sm:$0xff]
    %v71 = vld [vmem:[%s0 + $0x68] sm:$0xff]
    %v72 = vld [vmem:[%s0 + $0x70] sm:$0xff]
    %v73 = vld [vmem:[%s0 + $0x78] sm:$0xff]
    %vm74 = vcmask 523264
    %v76 = vsel %vm74, %v20, 0
    %v79 = vsel %vm74, %v21, 0
    %v82 = vsel %vm74, %v22, 0
    %v85 = vsel %vm74, %v23, 0
    %v88 = vsel %vm74, %v24, 0
    %v91 = vsel %vm74, %v25, 0
    %v94 = vsel %vm74, %v26, 0
    %v97 = vsel %vm74, %v27, 0
    %v100 = vsel %vm74, %v28, 0
    %v103 = vsel %vm74, %v29, 0
    %v106 = vsel %vm74, %v30, 0
    %v109 = vsel %vm74, %v31, 0
    %v112 = vsel %vm74, %v32, 0
    %v115 = vsel %vm74, %v33, 0
    %v118 = vsel %vm74, %v34, 0
    %v121 = vsel %vm74, %v35, 0
    %v124 = vsel %vm74, %v36, 0
    %v127 = vsel %vm74, %v37, 0
    %v130 = vsel %vm74, %v38, 0
    %v133 = vsel %vm74, %v39, 0
    %v136 = vsel %vm74, %v40, 0
    %v139 = vsel %vm74, %v41, 0
    %v142 = vsel %vm74, %v42, 0
    %v145 = vsel %vm74, %v43, 0
    %v148 = vsel %vm74, %v44, 0
    %v151 = vsel %vm74, %v45, 0
    %v154 = vsel %vm74, %v46, 0
    %v157 = vsel %vm74, %v47, 0
    %v160 = vsel %vm74, %v48, 0
    %v163 = vsel %vm74, %v49, 0
    %v166 = vsel %vm74, %v50, 0
    %v169 = vsel %vm74, %v51, 0
    %v172 = vsel %vm74, %v52, 0
    %v175 = vsel %vm74, %v53, 0
    %v178 = vsel %vm74, %v54, 0
    %v181 = vsel %vm74, %v55, 0
    %v184 = vsel %vm74, %v56, 0
    %v187 = vsel %vm74, %v57, 0
    %v190 = vsel %vm74, %v58, 0
    %v193 = vsel %vm74, %v59, 0
    %v196 = vsel %vm74, %v60, 0
    %v199 = vsel %vm74, %v61, 0
    %v202 = vsel %vm74, %v62, 0
    %v205 = vsel %vm74, %v63, 0
    %v208 = vsel %vm74, %v64, 0
    %v211 = vsel %vm74, %v65, 0
    %v214 = vsel %vm74, %v66, 0
    %v217 = vsel %vm74, %v67, 0
    %v220 = vsel %vm74, %v68, 0
    %v223 = vsel %vm74, %v69, 0
    %v226 = vsel %vm74, %v70, 0
    %v229 = vsel %vm74, %v71, 0
    %v232 = vsel %vm74, %v72, 0
    %v235 = vsel %vm74, %v73, 0
    %237 = vmatprep.subr.mxu0 0.0
    %238 = vmatpush1.xpose.msra.mxu0 %v190
    %239 = vmatprep.subr.mxu0 0.0
    %240 = vmatpush1.xpose.msra.mxu0 %v193
    %241 = vmatprep.subr.mxu0 0.0
    %242 = vmatpush1.xpose.msra.mxu0 %v196
    %243 = vmatprep.subr.mxu0 0.0
    %244 = vmatpush1.xpose.msra.mxu0 %v199
    %245 = vmatprep.subr.mxu0 0.0
    %246 = vmatpush1.xpose.msra.mxu0 %v202
    %247 = vmatprep.subr.mxu0 0.0
    %248 = vmatpush1.xpose.msra.mxu0 %v205
    %249 = vmatprep.subr.mxu0 0.0
    %250 = vmatpush1.xpose.msra.mxu0 %v208
    %251 = vmatprep.subr.mxu0 0.0
    %252 = vmatpush1.xpose.msra.mxu0 %v211
    %253 = vmatprep.subr.mxu0 0.0
    %254 = vmatpush1.xpose.msra.mxu0 %v214
    %255 = vmatprep.subr.mxu0 0.0
    %256 = vmatpush1.xpose.msra.mxu0 %v217
    %257 = vmatprep.subr.mxu0 0.0
    %258 = vmatpush1.xpose.msra.mxu0 %v220
    %259 = vmatprep.subr.mxu0 0.0
    %260 = vmatpush1.xpose.msra.mxu0 %v223
    %261 = vmatprep.subr.mxu0 0.0
    %262 = vmatpush1.xpose.msra.mxu0 %v226
    %263 = vmatprep.subr.mxu0 0.0
    %264 = vmatpush1.xpose.msra.mxu0 %v229
    %265 = vmatprep.subr.mxu0 0.0
    %266 = vmatpush1.xpose.msra.mxu0 %v232
    %267 = vmatprep.subr.mxu0 0.0
    %268 = vmatpush1.xpose.msra.mxu0 %v235
    %269 = vmatprep.subr.mxu0 0.0
    %270 = vmatpush1.xpose.msra.mxu0 0.0
    %271 = vmatprep.subr.mxu0 0.0
    %272 = vmatpush1.xpose.msra.mxu0 0.0
    %273 = vmatprep.subr.mxu0 0.0
    %274 = vmatpush1.xpose.msra.mxu0 0.0
    %275 = vmatprep.subr.mxu0 0.0
    %276 = vmatpush1.xpose.msra.mxu0 0.0
    %277 = vmatprep.subr.mxu0 0.0
    %278 = vmatpush1.xpose.msra.mxu0 0.0
    %279 = vmatprep.subr.mxu0 0.0
    %280 = vmatpush1.xpose.msra.mxu0 0.0
    %281 = vmatprep.subr.mxu0 0.0
    %282 = vmatpush1.xpose.msra.mxu0 0.0
    %283 = vmatprep.subr.mxu0 0.0
    %284 = vmatpush1.xpose.msra.mxu0 0.0
    %285 = vmatprep.subr.mxu0 0.0
    %286 = vmatpush1.xpose.msra.mxu0 0.0
    %287 = vmatprep.subr.mxu0 0.0
    %288 = vmatpush1.xpose.msra.mxu0 0.0
    %289 = vmatprep.subr.mxu0 0.0
    %290 = vmatpush1.xpose.msra.mxu0 0.0
    %291 = vmatprep.subr.mxu0 0.0
    %292 = vmatpush1.xpose.msra.mxu0 0.0
    %293 = vmatprep.subr.mxu0 0.0
    %294 = vmatpush1.xpose.msra.mxu0 0.0
    %295 = vmatprep.subr.mxu0 0.0
    %296 = vmatpush1.xpose.msra.mxu0 0.0
    %297 = vmatprep.subr.mxu0 0.0
    %298 = vmatpush1.xpose.msra.mxu0 0.0
    %299 = vmatprep.subr.mxu0 0.0
    %300 = vmatpush1.xpose.msra.mxu0 0.0
    %301 = vmatprep.mubr.f32.mxu0 0.0
    %302 = vmatmul.mubr.f32.gmra.mrb[0].mxu0 %v76
    %v303 = vpop.f32.mrb[0].mxu0
    %v304 = vadd.f32 0.0, %v303
    %v305 = vpop.f32.mrb[0].mxu0
    %306 = vmatprep.mubr.f32.mxu0 0.0
    %307 = vmatmul.mubr.f32.gmra.mrb[0].mxu0 %v79
    %v308 = vpop.f32.mrb[0].mxu0
    %v309 = vadd.f32 0.0, %v308
    %v310 = vpop.f32.mrb[0].mxu0
    %311 = vmatprep.mubr.f32.mxu0 0.0
    %312 = vmatmul.mubr.f32.gmra.mrb[0].mxu0 %v82
    %v313 = vpop.f32.mrb[0].mxu0
    %v314 = vadd.f32 0.0, %v313
    %v315 = vpop.f32.mrb[0].mxu0
    %316 = vmatprep.mubr.f32.mxu0 0.0
    %317 = vmatmul.mubr.f32.gmra.mrb[0].mxu0 %v85
    %v318 = vpop.f32.mrb[0].mxu0
    %v319 = vadd.f32 0.0, %v318
    %v320 = vpop.f32.mrb[0].mxu0
    %321 = vmatprep.mubr.f32.mxu0 0.0
    %322 = vmatmul.mubr.f32.gmra.mrb[0].mxu0 %v88
    %v323 = vpop.f32.mrb[0].mxu0
    %v324 = vadd.f32 0.0, %v323
    %v325 = vpop.f32.mrb[0].mxu0
    %326 = vmatprep.mubr.f32.mxu0 0.0
    %327 = vmatmul.mubr.f32.gmra.mrb[0].mxu0 %v91
    %v328 = vpop.f32.mrb[0].mxu0
    %v329 = vadd.f32 0.0, %v328
    %v330 = vpop.f32.mrb[0].mxu0
    %331 = vmatprep.mubr.f32.mxu0 0.0
    %332 = vmatmul.mubr.f32.gmra.mrb[0].mxu0 %v94
    %v333 = vpop.f32.mrb[0].mxu0
    %v334 = vadd.f32 0.0, %v333
    %v335 = vpop.f32.mrb[0].mxu0
    %336 = vmatprep.mubr.f32.mxu0 0.0
    %337 = vmatmul.mubr.f32.gmra.mrb[0].mxu0 %v97
    %v338 = vpop.f32.mrb[0].mxu0
    %v339 = vadd.f32 0.0, %v338
    %v340 = vpop.f32.mrb[0].mxu0
    %341 = vmatprep.mubr.f32.mxu0 0.0
    %342 = vmatmul.mubr.f32.gmra.mrb[0].mxu0 %v100
    %v343 = vpop.f32.mrb[0].mxu0
    %v344 = vadd.f32 0.0, %v343
    %v345 = vpop.f32.mrb[0].mxu0
    %346 = vmatprep.mubr.f32.mxu0 0.0
    %347 = vmatmul.mubr.f32.gmra.mrb[0].mxu0 %v103
    %v348 = vpop.f32.mrb[0].mxu0
    %v349 = vadd.f32 0.0, %v348
    %v350 = vpop.f32.mrb[0].mxu0
    %351 = vmatprep.mubr.f32.mxu0 0.0
    %352 = vmatmul.mubr.f32.gmra.mrb[0].mxu0 %v106
    %v353 = vpop.f32.mrb[0].mxu0
    %v354 = vadd.f32 0.0, %v353
    %v355 = vpop.f32.mrb[0].mxu0
    %356 = vmatprep.mubr.f32.mxu0 0.0
    %357 = vmatmul.mubr.f32.gmra.mrb[0].mxu0 %v109
    %v358 = vpop.f32.mrb[0].mxu0
    %v359 = vadd.f32 0.0, %v358
    %v360 = vpop.f32.mrb[0].mxu0
    %361 = vmatprep.mubr.f32.mxu0 0.0
    %362 = vmatmul.mubr.f32.gmra.mrb[0].mxu0 %v112
    %v363 = vpop.f32.mrb[0].mxu0
    %v364 = vadd.f32 0.0, %v363
    %v365 = vpop.f32.mrb[0].mxu0
    %366 = vmatprep.mubr.f32.mxu0 0.0
    %367 = vmatmul.mubr.f32.gmra.mrb[0].mxu0 %v115
    %v368 = vpop.f32.mrb[0].mxu0
    %v369 = vadd.f32 0.0, %v368
    %v370 = vpop.f32.mrb[0].mxu0
    %371 = vmatprep.mubr.f32.mxu0 0.0
    %372 = vmatmul.mubr.f32.gmra.mrb[0].mxu0 %v118
    %v373 = vpop.f32.mrb[0].mxu0
    %v374 = vadd.f32 0.0, %v373
    %v375 = vpop.f32.mrb[0].mxu0
    %376 = vmatprep.mubr.f32.mxu0 0.0
    %377 = vmatmul.mubr.f32.gmra.mrb[0].mxu0 %v121
    %v378 = vpop.f32.mrb[0].mxu0
    %v379 = vadd.f32 0.0, %v378
    %v380 = vpop.f32.mrb[0].mxu0
    %381 = vmatprep.mubr.f32.mxu0 0.0
    %382 = vmatmul.mubr.f32.gmra.mrb[0].mxu0 %v124
    %v383 = vpop.f32.mrb[0].mxu0
    %v384 = vadd.f32 0.0, %v383
    %v385 = vpop.f32.mrb[0].mxu0
    %386 = vmatprep.mubr.f32.mxu0 0.0
    %387 = vmatmul.mubr.f32.gmra.mrb[0].mxu0 %v127
    %v388 = vpop.f32.mrb[0].mxu0
    %v389 = vadd.f32 0.0, %v388
    %v390 = vpop.f32.mrb[0].mxu0
    %391 = vmatprep.mubr.f32.mxu0 0.0
    %392 = vmatmul.mubr.f32.gmra.mrb[0].mxu0 %v130
    %v393 = vpop.f32.mrb[0].mxu0
    %v394 = vadd.f32 0.0, %v393
    %v395 = vpop.f32.mrb[0].mxu0
    %396 = vmatprep.mubr.f32.mxu0 0.0
    %397 = vmatmul.mubr.f32.gmra.mrb[0].mxu0 %v133
    %v398 = vpop.f32.mrb[0].mxu0
    %v399 = vadd.f32 0.0, %v398
    %v400 = vpop.f32.mrb[0].mxu0
    %401 = vmatprep.mubr.f32.mxu0 0.0
    %402 = vmatmul.mubr.f32.gmra.mrb[0].mxu0 %v136
    %v403 = vpop.f32.mrb[0].mxu0
    %v404 = vadd.f32 0.0, %v403
    %v405 = vpop.f32.mrb[0].mxu0
    %406 = vmatprep.mubr.f32.mxu0 0.0
    %407 = vmatmul.mubr.f32.gmra.mrb[0].mxu0 %v139
    %v408 = vpop.f32.mrb[0].mxu0
    %v409 = vadd.f32 0.0, %v408
    %v410 = vpop.f32.mrb[0].mxu0
    %411 = vmatprep.mubr.f32.mxu0 0.0
    %412 = vmatmul.mubr.f32.gmra.mrb[0].mxu0 %v142
    %v413 = vpop.f32.mrb[0].mxu0
    %v414 = vadd.f32 0.0, %v413
    %v415 = vpop.f32.mrb[0].mxu0
    %416 = vmatprep.mubr.f32.mxu0 0.0
    %417 = vmatmul.mubr.f32.gmra.mrb[0].mxu0 %v145
    %v418 = vpop.f32.mrb[0].mxu0
    %v419 = vadd.f32 0.0, %v418
    %v420 = vpop.f32.mrb[0].mxu0
    %421 = vmatprep.mubr.f32.mxu0 0.0
    %422 = vmatmul.mubr.f32.gmra.mrb[0].mxu0 %v148
    %v423 = vpop.f32.mrb[0].mxu0
    %v424 = vadd.f32 0.0, %v423
    %v425 = vpop.f32.mrb[0].mxu0
    %426 = vmatprep.mubr.f32.mxu0 0.0
    %427 = vmatmul.mubr.f32.gmra.mrb[0].mxu0 %v151
    %v428 = vpop.f32.mrb[0].mxu0
    %v429 = vadd.f32 0.0, %v428
    %v430 = vpop.f32.mrb[0].mxu0
    %431 = vmatprep.mubr.f32.mxu0 0.0
    %432 = vmatmul.mubr.f32.gmra.mrb[0].mxu0 %v154
    %v433 = vpop.f32.mrb[0].mxu0
    %v434 = vadd.f32 0.0, %v433
    %v435 = vpop.f32.mrb[0].mxu0
    %436 = vmatprep.mubr.f32.mxu0 0.0
    %437 = vmatmul.mubr.f32.gmra.mrb[0].mxu0 %v157
    %v438 = vpop.f32.mrb[0].mxu0
    %v439 = vadd.f32 0.0, %v438
    %v440 = vpop.f32.mrb[0].mxu0
    %441 = vmatprep.mubr.f32.mxu0 0.0
    %442 = vmatmul.mubr.f32.gmra.mrb[0].mxu0 %v160
    %v443 = vpop.f32.mrb[0].mxu0
    %v444 = vadd.f32 0.0, %v443
    %v445 = vpop.f32.mrb[0].mxu0
    %446 = vmatprep.mubr.f32.mxu0 0.0
    %447 = vmatmul.mubr.f32.gmra.mrb[0].mxu0 %v163
    %v448 = vpop.f32.mrb[0].mxu0
    %v449 = vadd.f32 0.0, %v448
    %v450 = vpop.f32.mrb[0].mxu0
    %451 = vmatprep.mubr.f32.mxu0 0.0
    %452 = vmatmul.mubr.f32.gmra.mrb[0].mxu0 %v166
    %v453 = vpop.f32.mrb[0].mxu0
    %v454 = vadd.f32 0.0, %v453
    %v455 = vpop.f32.mrb[0].mxu0
    %456 = vmatprep.mubr.f32.mxu0 0.0
    %457 = vmatmul.mubr.f32.gmra.mrb[0].mxu0 %v169
    %v458 = vpop.f32.mrb[0].mxu0
    %v459 = vadd.f32 0.0, %v458
    %v460 = vpop.f32.mrb[0].mxu0
    %461 = vmatprep.mubr.f32.mxu0 0.0
    %462 = vmatmul.mubr.f32.gmra.mrb[0].mxu0 %v172
    %v463 = vpop.f32.mrb[0].mxu0
    %v464 = vadd.f32 0.0, %v463
    %v465 = vpop.f32.mrb[0].mxu0
    %466 = vmatprep.mubr.f32.mxu0 0.0
    %467 = vmatmul.mubr.f32.gmra.mrb[0].mxu0 %v175
    %v468 = vpop.f32.mrb[0].mxu0
    %v469 = vadd.f32 0.0, %v468
    %v470 = vpop.f32.mrb[0].mxu0
    %471 = vmatprep.mubr.f32.mxu0 0.0
    %472 = vmatmul.mubr.f32.gmra.mrb[0].mxu0 %v178
    %v473 = vpop.f32.mrb[0].mxu0
    %v474 = vadd.f32 0.0, %v473
    %v475 = vpop.f32.mrb[0].mxu0
    %476 = vmatprep.mubr.f32.mxu0 0.0
    %477 = vmatmul.mubr.f32.gmra.mrb[0].mxu0 %v181
    %v478 = vpop.f32.mrb[0].mxu0
    %v479 = vadd.f32 0.0, %v478
    %v480 = vpop.f32.mrb[0].mxu0
    %481 = vmatprep.mubr.f32.mxu0 0.0
    %482 = vmatmul.mubr.f32.gmra.mrb[0].mxu0 %v184
    %v483 = vpop.f32.mrb[0].mxu0
    %v484 = vadd.f32 0.0, %v483
    %v485 = vpop.f32.mrb[0].mxu0
    %486 = vmatprep.mubr.f32.mxu0 0.0
    %487 = vmatmul.mubr.f32.gmra.mrb[0].mxu0 %v187
    %v488 = vpop.f32.mrb[0].mxu0
    %v489 = vadd.f32 0.0, %v488
    %v490 = vpop.f32.mrb[0].mxu0
    %491 = vdwg.mxu0
    %s492 = smul.u32 0, 304
    %v493 = vlaneseq
    %v494 = vshrl.u32 %v493, 7
    %v495 = vadd.s32 %v494, 8
    %v496 = vadd.s32 %v494, 16
    %v497 = vadd.s32 %v494, 24
    %v498 = vadd.s32 %v494, 32
    %v499 = vadd.s32 %v494, 40
    %v500 = vadd.s32 %v494, 48
    %v501 = vadd.s32 %v494, 56
    %v502 = vadd.s32 %v494, 64
    %v503 = vadd.s32 %v494, 72
    %v504 = vadd.s32 %v494, 80
    %v505 = vadd.s32 %v494, 88
    %v506 = vadd.s32 %v494, 96
    %v507 = vadd.s32 %v494, 104
    %v508 = vadd.s32 %v494, 112
    %v509 = vadd.s32 %v494, 120
    %v510 = vadd.s32 %v494, 128
    %v511 = vadd.s32 %v494, 136
    %v512 = vadd.s32 %v494, 144
    %v513 = vadd.s32 %v494, 152
    %v514 = vadd.s32 %v494, 160
    %v515 = vadd.s32 %v494, 168
    %v516 = vadd.s32 %v494, 176
    %v517 = vadd.s32 %v494, 184
    %v518 = vadd.s32 %v494, 192
    %v519 = vadd.s32 %v494, 200
    %v520 = vadd.s32 %v494, 208
    %v521 = vadd.s32 %v494, 216
    %v522 = vadd.s32 %v494, 224
    %v523 = vadd.s32 %v494, 232
    %v524 = vadd.s32 %v494, 240
    %v525 = vadd.s32 %v494, 248
    %v526 = vadd.s32 %v494, 256
    %v527 = vadd.s32 %v494, 264
    %v528 = vadd.s32 %v494, 272
    %v529 = vadd.s32 %v494, 280
    %v530 = vadd.s32 %v494, 288
    %v531 = vadd.s32 %v494, 296
    %v532 = vstv %s492
    %v533 = vadd.s32 %v532, %v494
    %v534 = vadd.s32 %v532, %v495
    %v535 = vadd.s32 %v532, %v496
    %v536 = vadd.s32 %v532, %v497
    %v537 = vadd.s32 %v532, %v498
    %v538 = vadd.s32 %v532, %v499
    %v539 = vadd.s32 %v532, %v500
    %v540 = vadd.s32 %v532, %v501
    %v541 = vadd.s32 %v532, %v502
    %v542 = vadd.s32 %v532, %v503
    %v543 = vadd.s32 %v532, %v504
    %v544 = vadd.s32 %v532, %v505
    %v545 = vadd.s32 %v532, %v506
    %v546 = vadd.s32 %v532, %v507
    %v547 = vadd.s32 %v532, %v508
    %v548 = vadd.s32 %v532, %v509
    %v549 = vadd.s32 %v532, %v510
    %v550 = vadd.s32 %v532, %v511
    %v551 = vadd.s32 %v532, %v512
    %v552 = vadd.s32 %v532, %v513
    %v553 = vadd.s32 %v532, %v514
    %v554 = vadd.s32 %v532, %v515
    %v555 = vadd.s32 %v532, %v516
    %v556 = vadd.s32 %v532, %v517
    %v557 = vadd.s32 %v532, %v518
    %v558 = vadd.s32 %v532, %v519
    %v559 = vadd.s32 %v532, %v520
    %v560 = vadd.s32 %v532, %v521
    %v561 = vadd.s32 %v532, %v522
    %v562 = vadd.s32 %v532, %v523
    %v563 = vadd.s32 %v532, %v524
    %v564 = vadd.s32 %v532, %v525
    %v565 = vadd.s32 %v532, %v526
    %v566 = vadd.s32 %v532, %v527
    %v567 = vadd.s32 %v532, %v528
    %v568 = vadd.s32 %v532, %v529
    %v569 = vadd.s32 %v532, %v530
    %v570 = vadd.s32 %v532, %v531
    %vm571 = vcmp.lt.s32.totalorder %v533, 300
    %vm572 = vcmp.lt.s32.totalorder %v534, 300
    %vm573 = vcmp.lt.s32.totalorder %v535, 300
    %vm574 = vcmp.lt.s32.totalorder %v536, 300
    %vm575 = vcmp.lt.s32.totalorder %v537, 300
    %vm576 = vcmp.lt.s32.totalorder %v538, 300
    %vm577 = vcmp.lt.s32.totalorder %v539, 300
    %vm578 = vcmp.lt.s32.totalorder %v540, 300
    %vm579 = vcmp.lt.s32.totalorder %v541, 300
    %vm580 = vcmp.lt.s32.totalorder %v542, 300
    %vm581 = vcmp.lt.s32.totalorder %v543, 300
    %vm582 = vcmp.lt.s32.totalorder %v544, 300
    %vm583 = vcmp.lt.s32.totalorder %v545, 300
    %vm584 = vcmp.lt.s32.totalorder %v546, 300
    %vm585 = vcmp.lt.s32.totalorder %v547, 300
    %vm586 = vcmp.lt.s32.totalorder %v548, 300
    %vm587 = vcmp.lt.s32.totalorder %v549, 300
    %vm588 = vcmp.lt.s32.totalorder %v550, 300
    %vm589 = vcmp.lt.s32.totalorder %v551, 300
    %vm590 = vcmp.lt.s32.totalorder %v552, 300
    %vm591 = vcmp.lt.s32.totalorder %v553, 300
    %vm592 = vcmp.lt.s32.totalorder %v554, 300
    %vm593 = vcmp.lt.s32.totalorder %v555, 300
    %vm594 = vcmp.lt.s32.totalorder %v556, 300
    %vm595 = vcmp.lt.s32.totalorder %v557, 300
    %vm596 = vcmp.lt.s32.totalorder %v558, 300
    %vm597 = vcmp.lt.s32.totalorder %v559, 300
    %vm598 = vcmp.lt.s32.totalorder %v560, 300
    %vm599 = vcmp.lt.s32.totalorder %v561, 300
    %vm600 = vcmp.lt.s32.totalorder %v562, 300
    %vm601 = vcmp.lt.s32.totalorder %v563, 300
    %vm602 = vcmp.lt.s32.totalorder %v564, 300
    %vm603 = vcmp.lt.s32.totalorder %v565, 300
    %vm604 = vcmp.lt.s32.totalorder %v566, 300
    %vm605 = vcmp.lt.s32.totalorder %v567, 300
    %vm606 = vcmp.lt.s32.totalorder %v568, 300
    %vm607 = vcmp.lt.s32.totalorder %v569, 300
    %vm608 = vcmp.lt.s32.totalorder %v570, 300
    %v609 = vld [vmem:[%s2] sm:$0x1]
    %v611 = vlaneseq
    %v612 = vshrl.u32 %v611, 7
    %v613 = vsub.s32 0, %v612
    %v614 = vrot.slane %v609, %v613
    %vm616 = vcmp.gt.f32.partialorder %v304, %v614
    %vm617 = vcmp.gt.f32.partialorder %v309, %v614
    %vm618 = vcmp.gt.f32.partialorder %v314, %v614
    %vm619 = vcmp.gt.f32.partialorder %v319, %v614
    %vm620 = vcmp.gt.f32.partialorder %v324, %v614
    %vm621 = vcmp.gt.f32.partialorder %v329, %v614
    %vm622 = vcmp.gt.f32.partialorder %v334, %v614
    %vm623 = vcmp.gt.f32.partialorder %v339, %v614
    %vm624 = vcmp.gt.f32.partialorder %v344, %v614
    %vm625 = vcmp.gt.f32.partialorder %v349, %v614
    %vm626 = vcmp.gt.f32.partialorder %v354, %v614
    %vm627 = vcmp.gt.f32.partialorder %v359, %v614
    %vm628 = vcmp.gt.f32.partialorder %v364, %v614
    %vm629 = vcmp.gt.f32.partialorder %v369, %v614
    %vm630 = vcmp.gt.f32.partialorder %v374, %v614
    %vm631 = vcmp.gt.f32.partialorder %v379, %v614
    %vm632 = vcmp.gt.f32.partialorder %v384, %v614
    %vm633 = vcmp.gt.f32.partialorder %v389, %v614
    %vm634 = vcmp.gt.f32.partialorder %v394, %v614
    %vm635 = vcmp.gt.f32.partialorder %v399, %v614
    %vm636 = vcmp.gt.f32.partialorder %v404, %v614
    %vm637 = vcmp.gt.f32.partialorder %v409, %v614
    %vm638 = vcmp.gt.f32.partialorder %v414, %v614
    %vm639 = vcmp.gt.f32.partialorder %v419, %v614
    %vm640 = vcmp.gt.f32.partialorder %v424, %v614
    %vm641 = vcmp.gt.f32.partialorder %v429, %v614
    %vm642 = vcmp.gt.f32.partialorder %v434, %v614
    %vm643 = vcmp.gt.f32.partialorder %v439, %v614
    %vm644 = vcmp.gt.f32.partialorder %v444, %v614
    %vm645 = vcmp.gt.f32.partialorder %v449, %v614
    %vm646 = vcmp.gt.f32.partialorder %v454, %v614
    %vm647 = vcmp.gt.f32.partialorder %v459, %v614
    %vm648 = vcmp.gt.f32.partialorder %v464, %v614
    %vm649 = vcmp.gt.f32.partialorder %v469, %v614
    %vm650 = vcmp.gt.f32.partialorder %v474, %v614
    %vm651 = vcmp.gt.f32.partialorder %v479, %v614
    %vm652 = vcmp.gt.f32.partialorder %v484, %v614
    %vm653 = vcmp.gt.f32.partialorder %v489, %v614
    %vm654 = vmand %vm571, %vm616
    %vm655 = vmand %vm572, %vm617
    %vm656 = vmand %vm573, %vm618
    %vm657 = vmand %vm574, %vm619
    %vm658 = vmand %vm575, %vm620
    %vm659 = vmand %vm576, %vm621
    %vm660 = vmand %vm577, %vm622
    %vm661 = vmand %vm578, %vm623
    %vm662 = vmand %vm579, %vm624
    %vm663 = vmand %vm580, %vm625
    %vm664 = vmand %vm581, %vm626
    %vm665 = vmand %vm582, %vm627
    %vm666 = vmand %vm583, %vm628
    %vm667 = vmand %vm584, %vm629
    %vm668 = vmand %vm585, %vm630
    %vm669 = vmand %vm586, %vm631
    %vm670 = vmand %vm587, %vm632
    %vm671 = vmand %vm588, %vm633
    %vm672 = vmand %vm589, %vm634
    %vm673 = vmand %vm590, %vm635
    %vm674 = vmand %vm591, %vm636
    %vm675 = vmand %vm592, %vm637
    %vm676 = vmand %vm593, %vm638
    %vm677 = vmand %vm594, %vm639
    %vm678 = vmand %vm595, %vm640
    %vm679 = vmand %vm596, %vm641
    %vm680 = vmand %vm597, %vm642
    %vm681 = vmand %vm598, %vm643
    %vm682 = vmand %vm599, %vm644
    %vm683 = vmand %vm600, %vm645
    %vm684 = vmand %vm601, %vm646
    %vm685 = vmand %vm602, %vm647
    %vm686 = vmand %vm603, %vm648
    %vm687 = vmand %vm604, %vm649
    %vm688 = vmand %vm605, %vm650
    %vm689 = vmand %vm606, %vm651
    %vm690 = vmand %vm607, %vm652
    %vm691 = vmand %vm608, %vm653
    %v692 = vld [vmem:[#allocation2] sm:$0x1]
    %v693 = vsel %vm654, 1, 0
    %v694 = vsel %vm655, 1, 0
    %v695 = vsel %vm656, 1, 0
    %v696 = vsel %vm657, 1, 0
    %v697 = vsel %vm658, 1, 0
    %v698 = vsel %vm659, 1, 0
    %v699 = vsel %vm660, 1, 0
    %v700 = vsel %vm661, 1, 0
    %v701 = vsel %vm662, 1, 0
    %v702 = vsel %vm663, 1, 0
    %v703 = vsel %vm664, 1, 0
    %v704 = vsel %vm665, 1, 0
    %v705 = vsel %vm666, 1, 0
    %v706 = vsel %vm667, 1, 0
    %v707 = vsel %vm668, 1, 0
    %v708 = vsel %vm669, 1, 0
    %v709 = vsel %vm670, 1, 0
    %v710 = vsel %vm671, 1, 0
    %v711 = vsel %vm672, 1, 0
    %v712 = vsel %vm673, 1, 0
    %v713 = vsel %vm674, 1, 0
    %v714 = vsel %vm675, 1, 0
    %v715 = vsel %vm676, 1, 0
    %v716 = vsel %vm677, 1, 0
    %v717 = vsel %vm678, 1, 0
    %v718 = vsel %vm679, 1, 0
    %v719 = vsel %vm680, 1, 0
    %v720 = vsel %vm681, 1, 0
    %v721 = vsel %vm682, 1, 0
    %v722 = vsel %vm683, 1, 0
    %v723 = vsel %vm684, 1, 0
    %v724 = vsel %vm685, 1, 0
    %v725 = vsel %vm686, 1, 0
    %v726 = vsel %vm687, 1, 0
    %v727 = vsel %vm688, 1, 0
    %v728 = vsel %vm689, 1, 0
    %v729 = vsel %vm690, 1, 0
    %v730 = vsel %vm691, 1, 0
    %v731 = vcvt.s32.f32 %v693
    %v732 = vcvt.s32.f32 %v694
    %v733 = vcvt.s32.f32 %v695
    %v734 = vcvt.s32.f32 %v696
    %v735 = vcvt.s32.f32 %v697
    %v736 = vcvt.s32.f32 %v698
    %v737 = vcvt.s32.f32 %v699
    %v738 = vcvt.s32.f32 %v700
    %v739 = vcvt.s32.f32 %v701
    %v740 = vcvt.s32.f32 %v702
    %v741 = vcvt.s32.f32 %v703
    %v742 = vcvt.s32.f32 %v704
    %v743 = vcvt.s32.f32 %v705
    %v744 = vcvt.s32.f32 %v706
    %v745 = vcvt.s32.f32 %v707
    %v746 = vcvt.s32.f32 %v708
    %v747 = vcvt.s32.f32 %v709
    %v748 = vcvt.s32.f32 %v710
    %v749 = vcvt.s32.f32 %v711
    %v750 = vcvt.s32.f32 %v712
    %v751 = vcvt.s32.f32 %v713
    %v752 = vcvt.s32.f32 %v714
    %v753 = vcvt.s32.f32 %v715
    %v754 = vcvt.s32.f32 %v716
    %v755 = vcvt.s32.f32 %v717
    %v756 = vcvt.s32.f32 %v718
    %v757 = vcvt.s32.f32 %v719
    %v758 = vcvt.s32.f32 %v720
    %v759 = vcvt.s32.f32 %v721
    %v760 = vcvt.s32.f32 %v722
    %v761 = vcvt.s32.f32 %v723
    %v762 = vcvt.s32.f32 %v724
    %v763 = vcvt.s32.f32 %v725
    %v764 = vcvt.s32.f32 %v726
    %v765 = vcvt.s32.f32 %v727
    %v766 = vcvt.s32.f32 %v728
    %v767 = vcvt.s32.f32 %v729
    %v768 = vcvt.s32.f32 %v730
    %v769 = vadd.f32 %v731, %v732
    %v770 = vadd.f32 %v769, %v733
    %v771 = vadd.f32 %v770, %v734
    %v772 = vadd.f32 %v771, %v735
    %v773 = vadd.f32 %v772, %v736
    %v774 = vadd.f32 %v773, %v737
    %v775 = vadd.f32 %v774, %v738
    %v776 = vadd.f32 %v775, %v739
    %v777 = vadd.f32 %v776, %v740
    %v778 = vadd.f32 %v777, %v741
    %v779 = vadd.f32 %v778, %v742
    %v780 = vadd.f32 %v779, %v743
    %v781 = vadd.f32 %v780, %v744
    %v782 = vadd.f32 %v781, %v745
    %v783 = vadd.f32 %v782, %v746
    %v784 = vadd.f32 %v783, %v747
    %v785 = vadd.f32 %v784, %v748
    %v786 = vadd.f32 %v785, %v749
    %v787 = vadd.f32 %v786, %v750
    %v788 = vadd.f32 %v787, %v751
    %v789 = vadd.f32 %v788, %v752
    %v790 = vadd.f32 %v789, %v753
    %v791 = vadd.f32 %v790, %v754
    %v792 = vadd.f32 %v791, %v755
    %v793 = vadd.f32 %v792, %v756
    %v794 = vadd.f32 %v793, %v757
    %v795 = vadd.f32 %v794, %v758
    %v796 = vadd.f32 %v795, %v759
    %v797 = vadd.f32 %v796, %v760
    %v798 = vadd.f32 %v797, %v761
    %v799 = vadd.f32 %v798, %v762
    %v800 = vadd.f32 %v799, %v763
    %v801 = vadd.f32 %v800, %v764
    %v802 = vadd.f32 %v801, %v765
    %v803 = vadd.f32 %v802, %v766
    %v804 = vadd.f32 %v803, %v767
    %v805 = vadd.f32 %v804, %v768
    %v806 = vrot.slane %v805, 4
    %v807 = vadd.f32 %v805, %v806
    %v808 = vrot.slane %v807, 2
    %v809 = vadd.f32 %v807, %v808
    %v810 = vrot.slane %v809, 1
    %v811 = vadd.f32 %v809, %v810
    %v812 = vadd.f32 %v692, %v811
    %813 = vst [vmem:[#allocation2] sm:$0x1] %v812
    // Predicated region
    $region18: #{tpu_custom_call.1} parent=1 // pred_check
      _
    $region19: #{tpu_custom_call.1} parent=1 // pred_check_branch
      %815 = sbr.rel (0) target = $region21
    $region20: #{tpu_custom_call.1} parent=1 // pred_region
      %s817 = ssub.s32 16, 16
      %818 = vsyncadd [#allocation3], %s817
      %s820 = sshll.u32 [#allocation2], 4
      %s821 = int_to_ptr.vmem [resolvable:$true] %s820
      %823 = dma.vmem_to_hbm [thread:$0]  %s821, 16, %s3, [#allocation3]
    $region21: #{tpu_custom_call.1} parent=1 // pred_fallthru
      _
    // Predicated region
    $region22: #{tpu_custom_call.1} parent=1 // pred_check
      _
    $region23: #{tpu_custom_call.1} parent=1 // pred_check_branch
      %825 = sbr.rel (0) target = $region25
    $region24: #{tpu_custom_call.1} parent=1 // pred_region
      %826 = dma.done [#allocation3], 16
    $region25: #{tpu_custom_call.1} parent=1 // pred_fallthru
      _
    %827 = vsyncpa [#allocation3], 1

</llo_original>
